<compile_context>
chip_gen: v5e
topology: v5e:2x2
jax: 0.10.0
libtpu: 0.0.40
codegen_flags: <defaults>
</compile_context>

<pallas_src>
import functools

import jax
import jax.numpy as jnp
from jax.experimental import pallas as pl
from jax.experimental.pallas import tpu as pltpu

EPS = 1e-12  # F.normalize default eps


def _round_up(v, m):
    return ((v + m - 1) // m) * m


# ---------------------------------------------------------------------------
# Kernels
# ---------------------------------------------------------------------------
def _head_switch_kernel(x_ref, wf_ref, bf_ref, wh_ref, bh_ref, out_ref, *,
                        d_head, d_hyp):
    """Fused: (body∘head_linear) matmul -> L2 normalize (dim=1) -> head_hyp.

    Output slab layout (lane-dense, last dim padded to a multiple of 128):
      lanes [0, d_head)            : normalized head_linear output
      lanes [d_head, d_head+d_hyp) : head_hyp(normalized)
      remaining lanes              : zeros
    """
    x = x_ref[...]

    # Fused body+head_linear matmul: out = x @ (Wb@Wl) + (bb@Wl + bl)
    out = jnp.dot(x, wf_ref[...], preferred_element_type=jnp.float32) + bf_ref[...]

    # Row-wise squared L2 norm (XLU reduce).
    sq = jnp.sum(out * out, axis=-1, keepdims=True)

    # head_hyp matmul issued on the un-normalized rows so the MXU overlaps the
    # reduce/rsqrt; (out*inv) @ Wh == (out @ Wh) * inv  (inv is per-row scalar).
    h_raw = jnp.dot(out.astype(wh_ref.dtype), wh_ref[...],
                    preferred_element_type=jnp.float32)

    # 1/max(sqrt(sq), eps) == rsqrt(max(sq, eps^2))  -> single EUP op.
    inv = jax.lax.rsqrt(jnp.maximum(sq, EPS * EPS))

    n = out * inv
    h = h_raw * inv + bf32(bh_ref)

    pad = out_ref.shape[-1] - d_head - d_hyp
    pieces = [n, h]
    if pad:
        pieces.append(jnp.zeros((n.shape[0], pad), jnp.float32))
    slab = jnp.concatenate(pieces, axis=-1)
    out_ref[...] = slab.astype(out_ref.dtype)


def bf32(ref):
    return ref[...].astype(jnp.float32)


def _skip_head_kernel(x_ref, wb_ref, bb_ref, out_ref, *, d_body):
    """skip_head=True path: normalize(body(x), dim=1), lane-padded to 128."""
    x = x_ref[...]
    y = jnp.dot(x, wb_ref[...], preferred_element_type=jnp.float32) + bf32(bb_ref)
    sq = jnp.sum(y * y, axis=-1, keepdims=True)
    inv = jax.lax.rsqrt(jnp.maximum(sq, EPS * EPS))
    n = y * inv
    pad = out_ref.shape[-1] - d_body
    if pad:
        n = jnp.concatenate([n, jnp.zeros((n.shape[0], pad), jnp.float32)], axis=-1)
    out_ref[...] = n.astype(out_ref.dtype)


# ---------------------------------------------------------------------------
# Wrapper
# ---------------------------------------------------------------------------
@functools.partial(jax.jit, static_argnames=("skip_head", "use_bf16"))
def head_switch_forward(x, params, skip_head=False, use_bf16=False):
    B, d_in = x.shape
    wb, bb = params["body_w"], params["body_b"]
    wl, bl = params["head_linear_w"], params["head_linear_b"]
    wh, bh = params["head_hyp_w"], params["head_hyp_b"]

    # Batch tile: large multiple of 8 for pipelining; pad B so it divides evenly
    # (padded zero rows are harmless and sliced off below).
    TB = 512 if B >= 512 else _round_up(B, 8)
    B_pad = _round_up(B, TB)
    if B_pad != B:
        x = jnp.pad(x, ((0, B_pad - B), (0, 0)))
    grid = (B_pad // TB,)

    cp = pltpu.CompilerParams(dimension_semantics=("parallel",))
    x_spec = pl.BlockSpec((TB, d_in), lambda i: (i, 0))

    def resident(shape):
        # Whole-array block, constant block index -> stays VMEM-resident.
        return pl.BlockSpec(shape, lambda i: (0, 0))

    cast = (lambda a: a.astype(jnp.bfloat16)) if use_bf16 else (lambda a: a)

    if skip_head:
        d_body = wb.shape[1]
        slab_w = _round_up(d_body, 128)
        slab = pl.pallas_call(
            functools.partial(_skip_head_kernel, d_body=d_body),
            out_shape=jax.ShapeDtypeStruct((B_pad, slab_w), jnp.float32),
            grid=grid,
            in_specs=[x_spec, resident(wb.shape), resident(bb.shape)],
            out_specs=pl.BlockSpec((TB, slab_w), lambda i: (i, 0)),
            compiler_params=cp,
        )(cast(x), cast(wb), bb)
        return slab[:B, :d_body]

    # Fold body + head_linear (no nonlinearity between them).
    hi = jax.lax.Precision.HIGHEST
    w_fused = jnp.dot(wb, wl, precision=hi)             # (d_in, d_head)
    b_fused = jnp.dot(bb, wl, precision=hi) + bl        # (1,    d_head)

    d_head = wl.shape[1]
    d_hyp = wh.shape[1]
    slab_w = _round_up(d_head + d_hyp, 128)

    slab = pl.pallas_call(
        functools.partial(_head_switch_kernel, d_head=d_head, d_hyp=d_hyp),
        out_shape=jax.ShapeDtypeStruct((B_pad, slab_w), jnp.float32),
        grid=grid,
        in_specs=[
            x_spec,
            resident(w_fused.shape), resident(b_fused.shape),
            resident(wh.shape), resident(bh.shape),
        ],
        out_specs=pl.BlockSpec((TB, slab_w), lambda i: (i, 0)),
        compiler_params=cp,
    )(cast(x), cast(w_fused), b_fused, cast(wh), bh)

    norm_out = slab[:B, :d_head]
    hyp_out = slab[:B, d_head:d_head + d_hyp]
    return norm_out, hyp_out


# ---------------------------------------------------------------------------
# Pure-JAX reference (mirrors the PyTorch module semantics)
# ---------------------------------------------------------------------------
def reference_forward(x, params, skip_head=False):
    y = x @ params["body_w"] + params["body_b"]
    if skip_head:
        denom = jnp.maximum(jnp.linalg.norm(y, axis=1, keepdims=True), EPS)
        return y / denom
    out = y @ params["head_linear_w"] + params["head_linear_b"]
    denom = jnp.maximum(jnp.linalg.norm(out, axis=1, keepdims=True), EPS)
    n = out / denom
    h = n @ params["head_hyp_w"] + params["head_hyp_b"]
    return n, h


# ---------------------------------------------------------------------------
# Main
# ---------------------------------------------------------------------------
if __name__ == "__main__":
    B, D_IN, D_BODY, D_HEAD, D_HYP = 8, 32, 64, 16, 8

    key = jax.random.PRNGKey(0)
    k_x, k_wb, k_bb, k_wl, k_bl, k_wh, k_bh = jax.random.split(key, 7)

    x = jax.random.normal(k_x, (B, D_IN), dtype=jnp.float32)
    params = {
        # weights stored as (in_features, out_features) (transposed vs nn.Linear)
        "body_w": 0.1 * jax.random.normal(k_wb, (D_IN, D_BODY), jnp.float32),
        "body_b": 0.1 * jax.random.normal(k_bb, (1, D_BODY), jnp.float32),
        "head_linear_w": 0.1 * jax.random.normal(k_wl, (D_BODY, D_HEAD), jnp.float32),
        "head_linear_b": 0.1 * jax.random.normal(k_bl, (1, D_HEAD), jnp.float32),
        "head_hyp_w": 0.1 * jax.random.normal(k_wh, (D_HEAD, D_HYP), jnp.float32),
        "head_hyp_b": 0.1 * jax.random.normal(k_bh, (1, D_HYP), jnp.float32),
    }

    # f32 path (default): skip_head=False returns (normalized, head_hyp(normalized))
    norm_out, hyp_out = head_switch_forward(x, params, skip_head=False)
    jax.block_until_ready((norm_out, hyp_out))

    # skip_head=True path: normalize(body(x))
    skip_out = head_switch_forward(x, params, skip_head=True)
    jax.block_until_ready(skip_out)

    # correctness vs pure-JAX reference (fold changes f32 rounding order slightly)
    ref_norm, ref_hyp = reference_forward(x, params, skip_head=False)
    ref_skip = reference_forward(x, params, skip_head=True)
    assert jnp.allclose(norm_out, ref_norm, atol=1e-4, rtol=1e-4)
    assert jnp.allclose(hyp_out, ref_hyp, atol=1e-4, rtol=1e-4)
    assert jnp.allclose(skip_out, ref_skip, atol=1e-4, rtol=1e-4)

    # bf16 MXU-operand path (v6e/v7x): same semantics, looser tolerance
    n_bf, h_bf = head_switch_forward(x, params, skip_head=False, use_bf16=True)
    jax.block_until_ready((n_bf, h_bf))
    assert jnp.allclose(n_bf, ref_norm, atol=5e-2, rtol=5e-2)
    assert jnp.allclose(h_bf, ref_hyp, atol=5e-2, rtol=5e-2)

    print("KERNEL_OK")
</pallas_src>

<mosaic_0001>
module attributes {stable_mosaic.version = 11 : i64} {
  func.func @_head_switch_kernel(%arg0: i32, %arg1: memref<8x32xf32, #tpu.memory_space<vmem>>, %arg2: memref<32x16xf32, #tpu.memory_space<vmem>>, %arg3: memref<1x16xf32, #tpu.memory_space<vmem>>, %arg4: memref<16x8xf32, #tpu.memory_space<vmem>>, %arg5: memref<1x8xf32, #tpu.memory_space<vmem>>, %arg6: memref<8x128xf32, #tpu.memory_space<vmem>>) attributes {dimension_semantics = [#tpu.dimension_semantics<parallel>], iteration_bounds = array<i64: 1>, scalar_prefetch = 0 : i64, scratch_operands = 0 : i64, tpu.core_type = #tpu.core_type<tc>, window_params = [{transform_indices = @transform_0, window_bounds = array<i64: 8, 32>}, {pipeline_mode = #tpu.pipeline_mode<synchronous>, transform_indices = @transform_1, window_bounds = array<i64: 32, 16>}, {pipeline_mode = #tpu.pipeline_mode<synchronous>, transform_indices = @transform_2, window_bounds = array<i64: 1, 16>}, {pipeline_mode = #tpu.pipeline_mode<synchronous>, transform_indices = @transform_3, window_bounds = array<i64: 16, 8>}, {pipeline_mode = #tpu.pipeline_mode<synchronous>, transform_indices = @transform_4, window_bounds = array<i64: 1, 8>}, {transform_indices = @transform_5, window_bounds = array<i64: 8, 128>}]} {
    %c0 = arith.constant 0 : index
    %c0_0 = arith.constant 0 : index
    %0 = vector.load %arg1[%c0, %c0_0] : memref<8x32xf32, #tpu.memory_space<vmem>>, vector<8x32xf32>
    %c0_1 = arith.constant 0 : index
    %c0_2 = arith.constant 0 : index
    %1 = vector.load %arg2[%c0_1, %c0_2] : memref<32x16xf32, #tpu.memory_space<vmem>>, vector<32x16xf32>
    %cst = arith.constant dense<0.000000e+00> : vector<8x16xf32>
    %2 = tpu.matmul %0, %1, %cst {dimension_numbers = #tpu.dot_dimension_numbers<[1], [0], [0], [1], [0, 0, 1, 1], [], []>} : vector<8x32xf32>, vector<32x16xf32>, vector<8x16xf32> -> vector<8x16xf32>
    %c0_3 = arith.constant 0 : index
    %c0_4 = arith.constant 0 : index
    %3 = vector.load %arg3[%c0_3, %c0_4] : memref<1x16xf32, #tpu.memory_space<vmem>>, vector<1x16xf32>
    %4 = vector.broadcast %3 : vector<1x16xf32> to vector<8x16xf32>
    %5 = arith.addf %2, %4 : vector<8x16xf32>
    %6 = arith.mulf %5, %5 : vector<8x16xf32>
    %cst_5 = arith.constant dense<0.000000e+00> : vector<8xf32>
    %7 = vector.multi_reduction <add>, %6, %cst_5 [1] : vector<8x16xf32> to vector<8xf32>
    %8 = vector.shape_cast %7 : vector<8xf32> to vector<8x1xf32>
    %c0_6 = arith.constant 0 : index
    %c0_7 = arith.constant 0 : index
    %9 = vector.load %arg4[%c0_6, %c0_7] : memref<16x8xf32, #tpu.memory_space<vmem>>, vector<16x8xf32>
    %cst_8 = arith.constant dense<0.000000e+00> : vector<8x8xf32>
    %10 = tpu.matmul %5, %9, %cst_8 {dimension_numbers = #tpu.dot_dimension_numbers<[1], [0], [0], [1], [0, 0, 1, 1], [], []>} : vector<8x16xf32>, vector<16x8xf32>, vector<8x8xf32> -> vector<8x8xf32>
    %cst_9 = arith.constant 1.000000e-24 : f32
    %11 = vector.broadcast %cst_9 : f32 to vector<8x1xf32>
    %12 = arith.maximumf %8, %11 : vector<8x1xf32>
    %13 = math.rsqrt %12 : vector<8x1xf32>
    %14 = vector.broadcast %13 : vector<8x1xf32> to vector<8x16xf32>
    %15 = arith.mulf %5, %14 : vector<8x16xf32>
    %16 = vector.broadcast %13 : vector<8x1xf32> to vector<8x8xf32>
    %17 = arith.mulf %10, %16 : vector<8x8xf32>
    %c0_10 = arith.constant 0 : index
    %c0_11 = arith.constant 0 : index
    %18 = vector.load %arg5[%c0_10, %c0_11] : memref<1x8xf32, #tpu.memory_space<vmem>>, vector<1x8xf32>
    %19 = vector.broadcast %18 : vector<1x8xf32> to vector<8x8xf32>
    %20 = arith.addf %17, %19 : vector<8x8xf32>
    %cst_12 = arith.constant 0.000000e+00 : f32
    %21 = vector.broadcast %cst_12 : f32 to vector<8x104xf32>
    %22 = tpu.concatenate %15, %20, %21 in 1 : vector<8x16xf32>, vector<8x8xf32>, vector<8x104xf32> -> vector<8x128xf32>
    %c0_13 = arith.constant 0 : index
    %c0_14 = arith.constant 0 : index
    %23 = vector.load %arg6[%c0_13, %c0_14] : memref<8x128xf32, #tpu.memory_space<vmem>>, vector<8x128xf32>
    tpu.vector_store %arg6[%c0_13, %c0_14], %22 {strides = array<i32>} : memref<8x128xf32, #tpu.memory_space<vmem>>, vector<8x128xf32>,
    return
  }
  func.func @transform_0(%arg0: i32) -> (i32, i32) {
    %c0_i32 = arith.constant 0 : i32
    %c0_i32_0 = arith.constant 0 : i32
    return %arg0, %c0_i32 : i32, i32
  }
  func.func @transform_1(%arg0: i32) -> (i32, i32) {
    %c0_i32 = arith.constant 0 : i32
    %c0_i32_0 = arith.constant 0 : i32
    %c0_i32_1 = arith.constant 0 : i32
    return %c0_i32, %c0_i32_0 : i32, i32
  }
  func.func @transform_2(%arg0: i32) -> (i32, i32) {
    %c0_i32 = arith.constant 0 : i32
    %c0_i32_0 = arith.constant 0 : i32
    %c0_i32_1 = arith.constant 0 : i32
    return %c0_i32, %c0_i32_0 : i32, i32
  }
  func.func @transform_3(%arg0: i32) -> (i32, i32) {
    %c0_i32 = arith.constant 0 : i32
    %c0_i32_0 = arith.constant 0 : i32
    %c0_i32_1 = arith.constant 0 : i32
    return %c0_i32, %c0_i32_0 : i32, i32
  }
  func.func @transform_4(%arg0: i32) -> (i32, i32) {
    %c0_i32 = arith.constant 0 : i32
    %c0_i32_0 = arith.constant 0 : i32
    %c0_i32_1 = arith.constant 0 : i32
    return %c0_i32, %c0_i32_0 : i32, i32
  }
  func.func @transform_5(%arg0: i32) -> (i32, i32) {
    %c0_i32 = arith.constant 0 : i32
    %c0_i32_0 = arith.constant 0 : i32
    return %arg0, %c0_i32 : i32, i32
  }
}

</mosaic_0001>

<llo_original>
// kernel: head_switch_forward.1
$region0: #{head_switch_forward.1}
  #allocation0 [shape = 'u32[]', space=smem, size = 0x4, offset = 0x4, fixed_abs, tag = 'smem constant byte address 0x4 - core index']
  #allocation1 [shape = 'u32[72,128]{1,0:T(1,128)}', space=vmem, size = 0x9000, scoped, tag = 'internal scratch']
  %s0 = inlined_call_operand.vmem [shape: f32[8,32], index: 0, kind: input, shape index: {}]
  %s1 = inlined_call_operand.vmem [shape: f32[32,16], index: 1, kind: input, shape index: {}]
  %s2 = inlined_call_operand.vmem [shape: f32[1,16], index: 2, kind: input, shape index: {}]
  %s3 = inlined_call_operand.vmem [shape: f32[16,8], index: 3, kind: input, shape index: {}]
  %s4 = inlined_call_operand.vmem [shape: f32[1,8], index: 4, kind: input, shape index: {}]
  %s5 = inlined_call_operand.vmem [shape: f32[8,128], index: 5, kind: output, shape index: {}]
  %s6 = sld [smem:[#allocation0]]
  $region30: #{head_switch_forward.1} parent=0
    _
  %s8 = ssub.s32 1, %s6
  %s9 = scalar_select 0, %s8, %s6
  // Predicated region
  $region2: #{head_switch_forward.1} parent=0 // pred_check
    _
  $region3: #{head_switch_forward.1} parent=0 // pred_check_branch
    %11 = sbr.rel (0) target = $region5
  $region4: #{head_switch_forward.1} parent=0 // pred_region
    _
  $region5: #{head_switch_forward.1} parent=0 // pred_fallthru
    _
  // Predicated region
  $region6: #{head_switch_forward.1} parent=0 // pred_check
    _
  $region7: #{head_switch_forward.1} parent=0 // pred_check_branch
    %13 = sbr.rel (0) target = $region9
  $region8: #{head_switch_forward.1} parent=0 // pred_region
    _
  $region9: #{head_switch_forward.1} parent=0 // pred_fallthru
    _
  // Predicated region
  $region10: #{head_switch_forward.1} parent=0 // pred_check
    _
  $region11: #{head_switch_forward.1} parent=0 // pred_check_branch
    %15 = sbr.rel (0) target = $region13
  $region12: #{head_switch_forward.1} parent=0 // pred_region
    _
  $region13: #{head_switch_forward.1} parent=0 // pred_fallthru
    _
  // Predicated region
  $region14: #{head_switch_forward.1} parent=0 // pred_check
    _
  $region15: #{head_switch_forward.1} parent=0 // pred_check_branch
    %17 = sbr.rel (0) target = $region17
  $region16: #{head_switch_forward.1} parent=0 // pred_region
    _
  $region17: #{head_switch_forward.1} parent=0 // pred_fallthru
    _
  // Predicated region
  $region18: #{head_switch_forward.1} parent=0 // pred_check
    _
  $region19: #{head_switch_forward.1} parent=0 // pred_check_branch
    %19 = sbr.rel (0) target = $region21
  $region20: #{head_switch_forward.1} parent=0 // pred_region
    _
  $region21: #{head_switch_forward.1} parent=0 // pred_fallthru
    _
  %v20 = vld [vmem:[%s0] sm:$0xff]
  %v21 = vld [vmem:[%s1] sm:$0xff]
  %v22 = vld [vmem:[%s1 + $0x8] sm:$0xff]
  %v23 = vld [vmem:[%s1 + $0x10] sm:$0xff]
  %v24 = vld [vmem:[%s1 + $0x18] sm:$0xff]
  %v25 = vld [vmem:[%s2] sm:$0x1]
  %v27 = vperm.slane %v25, 0
  %vm29 = vcmask 261120
  %v31 = vsel %vm29, %v20, 0
  %33 = vmatpush.msra.mxu0 0.0
  %34 = vmatpush.msra.mxu0 0.0
  %35 = vmatpush.msra.mxu0 0.0
  %36 = vmatpush.msra.mxu0 0.0
  %37 = vmatpush.msra.mxu0 0.0
  %38 = vmatpush.msra.mxu0 0.0
  %39 = vmatpush.msra.mxu0 0.0
  %40 = vmatpush.msra.mxu0 0.0
  %41 = vmatpush.msra.mxu0 0.0
  %42 = vmatpush.msra.mxu0 0.0
  %43 = vmatpush.msra.mxu0 0.0
  %44 = vmatpush.msra.mxu0 0.0
  %45 = vmatpush.msra.mxu0 %v24
  %46 = vmatpush.msra.mxu0 %v23
  %47 = vmatpush.msra.mxu0 %v22
  %48 = vmatpush.msra.mxu0 %v21
  %49 = vmatmul.f32.gmra.mxu0 %v31
  %v50 = vpop.f32.mrf.mxu0
  %v51 = vadd.f32 %v27, %v50
  %52 = vdwg.mxu0
  %v53 = vmul.f32 %v51, %v51
  %vm54 = vcmask 130048
  %v55 = vsel %vm54, %v53, 0.0
  %56 = vadd.xlane.f32.xlu0 %v55
  %v57 = vpop.xlane.xlu0 %56
  %v58 = vld [vmem:[%s3] sm:$0xff]
  %v59 = vld [vmem:[%s3 + $0x8] sm:$0xff]
  %v61 = vsel %vm54, %v51, 0
  %63 = vmatpush.msra.mxu0 0.0
  %64 = vmatpush.msra.mxu0 0.0
  %65 = vmatpush.msra.mxu0 0.0
  %66 = vmatpush.msra.mxu0 0.0
  %67 = vmatpush.msra.mxu0 0.0
  %68 = vmatpush.msra.mxu0 0.0
  %69 = vmatpush.msra.mxu0 0.0
  %70 = vmatpush.msra.mxu0 0.0
  %71 = vmatpush.msra.mxu0 0.0
  %72 = vmatpush.msra.mxu0 0.0
  %73 = vmatpush.msra.mxu0 0.0
  %74 = vmatpush.msra.mxu0 0.0
  %75 = vmatpush.msra.mxu0 0.0
  %76 = vmatpush.msra.mxu0 0.0
  %77 = vmatpush.msra.mxu0 %v59
  %78 = vmatpush.msra.mxu0 %v58
  %79 = vmatmul.f32.gmra.mxu0 %v61
  %v80 = vpop.f32.mrf.mxu0
  %v81 = vadd.f32 0.0, %v80
  %82 = vdwg.mxu0
  %v83 = vmax.f32 %v57, 1e-24
  %v84 = vrsqrt.pop %v83
  %v85 = vmul.f32 %v84, %v83
  %v86 = vmul.f32 %v85, %v84
  %v87 = vmul.f32 0.5, %v86
  %v88 = vsub.f32 1.5, %v87
  %v89 = vmul.f32 %v84, %v88
  %vm90 = vweird.f32 %v83
  %vm91 = vweird.f32 %v84
  %vm92 = vmor %vm90, %vm91
  %v93 = vsel %vm92, %v84, %v89
  %v94 = vmul.f32 %v51, %v93
  %v95 = vmul.f32 %v81, %v93
  %v96 = vld [vmem:[%s4] sm:$0x1]
  %v98 = vperm.slane %v96, 0
  %v100 = vadd.f32 %v95, %v98
  %102 = vrot.lane.b32.xlu0 %v100, 16
  %v103 = vpop.permute.xlu0 %102
  %v105 = vsel %vm54, %v94, %v103
  %vm106 = vcmask 195584
  %v107 = vsel %vm106, %v105, 0.0
  %108 = vst [vmem:[%s5] sm:$0xff] %v107
  // Predicated region
  $region22: #{head_switch_forward.1} parent=0 // pred_check
    _
  $region23: #{head_switch_forward.1} parent=0 // pred_check_branch
    %110 = sbr.rel (0) target = $region25
  $region24: #{head_switch_forward.1} parent=0 // pred_region
    _
  $region25: #{head_switch_forward.1} parent=0 // pred_fallthru
    _
  // Predicated region
  $region26: #{head_switch_forward.1} parent=0 // pred_check
    _
  $region27: #{head_switch_forward.1} parent=0 // pred_check_branch
    %112 = sbr.rel (0) target = $region29
  $region28: #{head_switch_forward.1} parent=0 // pred_region
    _
  $region29: #{head_switch_forward.1} parent=0 // pred_fallthru
    _

</llo_original>
